<compile_context>
chip_gen: v7x
topology: tpu7x:2x2x1
jax: 0.10.0
libtpu: 0.0.40
codegen_flags: <defaults>
</compile_context>

<pallas_src>
import functools

import jax
import jax.numpy as jnp
from jax.experimental import pallas as pl
from jax.experimental.pallas import tpu as pltpu

IN_F, H1, H2, OUT_F = 15, 64, 32, 3
OUT_PAD = 128  # lane-dense padded output width


def _round_up(x, m):
    return ((x + m - 1) // m) * m


def mlp_kernel(x_ref, w1_ref, b1_ref, w2_ref, b2_ref, w3_ref, b3_ref, o_ref):
    # x / weights arrive as bf16; all matmuls accumulate in f32 on the MXU.
    x = x_ref[...]
    h1 = jnp.dot(x, w1_ref[...], preferred_element_type=jnp.float32) + b1_ref[...]
    h1 = jnp.maximum(h1, 0.0)
    h2 = (
        jnp.dot(h1.astype(jnp.bfloat16), w2_ref[...], preferred_element_type=jnp.float32)
        + b2_ref[...]
    )
    h2 = jnp.maximum(h2, 0.0)
    out = (
        jnp.dot(h2.astype(jnp.bfloat16), w3_ref[...], preferred_element_type=jnp.float32)
        + b3_ref[...]
    )
    o_ref[...] = out  # lane-dense (TILE_B, 128) f32 store


@functools.partial(jax.jit, static_argnames=("tile_b",))
def mlp_forward(x, w1, b1, w2, b2, w3, b3, *, tile_b=1024):
    # NOTE: for tiny batches the fixed pallas_call cost dominates; a plain-JAX
    # fallback would be as fast.  We always use the kernel here for the demo.
    B = x.shape[0]
    tb = min(tile_b, _round_up(B, 8))          # tile rows (multiple of 8 sublanes)
    B_pad = _round_up(B, tb)                   # pad batch to a tile multiple
    if B_pad != B:
        x = jnp.pad(x, ((0, B_pad - B), (0, 0)))

    # bf16 activations/weights (f32 accumulation in-kernel), f32 biases.
    x_bf = x.astype(jnp.bfloat16)
    w1_bf = w1.astype(jnp.bfloat16)
    w2_bf = w2.astype(jnp.bfloat16)
    # Zero-pad the last layer to 128 output columns for lane-dense stores.
    w3_p = jnp.pad(w3, ((0, 0), (0, OUT_PAD - OUT_F))).astype(jnp.bfloat16)
    b3_p = jnp.pad(b3, ((0, 0), (0, OUT_PAD - OUT_F))).astype(jnp.float32)

    grid = (B_pad // tb,)
    const = lambda shape: pl.BlockSpec(shape, lambda i: (0, 0))  # VMEM-resident

    out_pad = pl.pallas_call(
        mlp_kernel,
        out_shape=jax.ShapeDtypeStruct((B_pad, OUT_PAD), jnp.float32),
        grid=grid,
        in_specs=[
            pl.BlockSpec((tb, IN_F), lambda i: (i, 0)),   # x tile (pipelined)
            const((IN_F, H1)),
            const((1, H1)),
            const((H1, H2)),
            const((1, H2)),
            const((H2, OUT_PAD)),
            const((1, OUT_PAD)),
        ],
        out_specs=pl.BlockSpec((tb, OUT_PAD), lambda i: (i, 0)),
        compiler_params=pltpu.CompilerParams(
            dimension_semantics=("parallel",),
            vmem_limit_bytes=32 << 20,
        ),
    )(x_bf, w1_bf, b1, w2_bf, b2, w3_p, b3_p)

    return out_pad[:B, :OUT_F]


def init_params(key):
    # Deterministic init mimicking PyTorch Linear default:
    # U(-1/sqrt(fan_in), 1/sqrt(fan_in))
    keys = jax.random.split(key, 6)

    def linear(kw, kb, fan_in, fan_out):
        bound = 1.0 / (fan_in ** 0.5)
        w = jax.random.uniform(kw, (fan_in, fan_out), jnp.float32, -bound, bound)
        b = jax.random.uniform(kb, (1, fan_out), jnp.float32, -bound, bound)
        return w, b

    w1, b1 = linear(keys[0], keys[1], IN_F, H1)
    w2, b2 = linear(keys[2], keys[3], H1, H2)
    w3, b3 = linear(keys[4], keys[5], H2, OUT_F)
    return w1, b1, w2, b2, w3, b3


if __name__ == "__main__":
    key = jax.random.PRNGKey(0)
    k_x, k_p = jax.random.split(key)
    B = 8
    x = jax.random.normal(k_x, (B, IN_F), jnp.float32)
    params = init_params(k_p)

    out = mlp_forward(x, *params)
    out = jax.block_until_ready(out)
    assert out.shape == (B, OUT_F)

    # Reference in plain JAX using the same bf16-input / f32-accumulate math.
    w1, b1, w2, b2, w3, b3 = params
    h = jnp.dot(x.astype(jnp.bfloat16), w1.astype(jnp.bfloat16),
                preferred_element_type=jnp.float32) + b1
    h = jnp.maximum(h, 0.0)
    h = jnp.dot(h.astype(jnp.bfloat16), w2.astype(jnp.bfloat16),
                preferred_element_type=jnp.float32) + b2
    h = jnp.maximum(h, 0.0)
    ref = jnp.dot(h.astype(jnp.bfloat16), w3.astype(jnp.bfloat16),
                  preferred_element_type=jnp.float32) + b3
    assert jnp.allclose(out, ref, atol=1e-3, rtol=1e-3)

    # Sanity vs. full-f32 reference (bf16 quantization tolerance).
    ref32 = jnp.maximum(x @ w1 + b1, 0.0)
    ref32 = jnp.maximum(ref32 @ w2 + b2, 0.0)
    ref32 = ref32 @ w3 + b3
    assert jnp.allclose(out, ref32, atol=5e-2, rtol=5e-2)

    print("KERNEL_OK")
</pallas_src>

<mosaic_0001>
module attributes {stable_mosaic.version = 11 : i64} {
  func.func @mlp_kernel(%arg0: i32, %arg1: memref<8x15xbf16, #tpu.memory_space<vmem>>, %arg2: memref<15x64xbf16, #tpu.memory_space<vmem>>, %arg3: memref<1x64xf32, #tpu.memory_space<vmem>>, %arg4: memref<64x32xbf16, #tpu.memory_space<vmem>>, %arg5: memref<1x32xf32, #tpu.memory_space<vmem>>, %arg6: memref<32x128xbf16, #tpu.memory_space<vmem>>, %arg7: memref<1x128xf32, #tpu.memory_space<vmem>>, %arg8: memref<8x128xf32, #tpu.memory_space<vmem>>) attributes {dimension_semantics = [#tpu.dimension_semantics<parallel>], iteration_bounds = array<i64: 1>, scalar_prefetch = 0 : i64, scratch_operands = 0 : i64, tpu.core_type = #tpu.core_type<tc>, window_params = [{transform_indices = @transform_0, window_bounds = array<i64: 8, 15>}, {pipeline_mode = #tpu.pipeline_mode<synchronous>, transform_indices = @transform_1, window_bounds = array<i64: 15, 64>}, {pipeline_mode = #tpu.pipeline_mode<synchronous>, transform_indices = @transform_2, window_bounds = array<i64: 1, 64>}, {pipeline_mode = #tpu.pipeline_mode<synchronous>, transform_indices = @transform_3, window_bounds = array<i64: 64, 32>}, {pipeline_mode = #tpu.pipeline_mode<synchronous>, transform_indices = @transform_4, window_bounds = array<i64: 1, 32>}, {pipeline_mode = #tpu.pipeline_mode<synchronous>, transform_indices = @transform_5, window_bounds = array<i64: 32, 128>}, {pipeline_mode = #tpu.pipeline_mode<synchronous>, transform_indices = @transform_6, window_bounds = array<i64: 1, 128>}, {transform_indices = @transform_7, window_bounds = array<i64: 8, 128>}]} {
    %c0 = arith.constant 0 : index
    %c0_0 = arith.constant 0 : index
    %0 = vector.load %arg1[%c0, %c0_0] : memref<8x15xbf16, #tpu.memory_space<vmem>>, vector<8x15xbf16>
    %c0_1 = arith.constant 0 : index
    %c0_2 = arith.constant 0 : index
    %1 = vector.load %arg2[%c0_1, %c0_2] : memref<15x64xbf16, #tpu.memory_space<vmem>>, vector<15x64xbf16>
    %cst = arith.constant dense<0.000000e+00> : vector<8x64xf32>
    %2 = tpu.matmul %0, %1, %cst {dimension_numbers = #tpu.dot_dimension_numbers<[1], [0], [0], [1], [0, 0, 1, 1], [], []>} : vector<8x15xbf16>, vector<15x64xbf16>, vector<8x64xf32> -> vector<8x64xf32>
    %c0_3 = arith.constant 0 : index
    %c0_4 = arith.constant 0 : index
    %3 = vector.load %arg3[%c0_3, %c0_4] : memref<1x64xf32, #tpu.memory_space<vmem>>, vector<1x64xf32>
    %4 = vector.broadcast %3 : vector<1x64xf32> to vector<8x64xf32>
    %5 = arith.addf %2, %4 : vector<8x64xf32>
    %cst_5 = arith.constant 0.000000e+00 : f32
    %6 = vector.broadcast %cst_5 : f32 to vector<8x64xf32>
    %7 = arith.maximumf %5, %6 : vector<8x64xf32>
    %8 = arith.truncf %7 : vector<8x64xf32> to vector<8x64xbf16>
    %c0_6 = arith.constant 0 : index
    %c0_7 = arith.constant 0 : index
    %9 = vector.load %arg4[%c0_6, %c0_7] : memref<64x32xbf16, #tpu.memory_space<vmem>>, vector<64x32xbf16>
    %cst_8 = arith.constant dense<0.000000e+00> : vector<8x32xf32>
    %10 = tpu.matmul %8, %9, %cst_8 {dimension_numbers = #tpu.dot_dimension_numbers<[1], [0], [0], [1], [0, 0, 1, 1], [], []>} : vector<8x64xbf16>, vector<64x32xbf16>, vector<8x32xf32> -> vector<8x32xf32>
    %c0_9 = arith.constant 0 : index
    %c0_10 = arith.constant 0 : index
    %11 = vector.load %arg5[%c0_9, %c0_10] : memref<1x32xf32, #tpu.memory_space<vmem>>, vector<1x32xf32>
    %12 = vector.broadcast %11 : vector<1x32xf32> to vector<8x32xf32>
    %13 = arith.addf %10, %12 : vector<8x32xf32>
    %cst_11 = arith.constant 0.000000e+00 : f32
    %14 = vector.broadcast %cst_11 : f32 to vector<8x32xf32>
    %15 = arith.maximumf %13, %14 : vector<8x32xf32>
    %16 = arith.truncf %15 : vector<8x32xf32> to vector<8x32xbf16>
    %c0_12 = arith.constant 0 : index
    %c0_13 = arith.constant 0 : index
    %17 = vector.load %arg6[%c0_12, %c0_13] : memref<32x128xbf16, #tpu.memory_space<vmem>>, vector<32x128xbf16>
    %cst_14 = arith.constant dense<0.000000e+00> : vector<8x128xf32>
    %18 = tpu.matmul %16, %17, %cst_14 {dimension_numbers = #tpu.dot_dimension_numbers<[1], [0], [0], [1], [0, 0, 1, 1], [], []>} : vector<8x32xbf16>, vector<32x128xbf16>, vector<8x128xf32> -> vector<8x128xf32>
    %c0_15 = arith.constant 0 : index
    %c0_16 = arith.constant 0 : index
    %19 = vector.load %arg7[%c0_15, %c0_16] : memref<1x128xf32, #tpu.memory_space<vmem>>, vector<1x128xf32>
    %20 = vector.broadcast %19 : vector<1x128xf32> to vector<8x128xf32>
    %21 = arith.addf %18, %20 : vector<8x128xf32>
    %c0_17 = arith.constant 0 : index
    %c0_18 = arith.constant 0 : index
    %22 = vector.load %arg8[%c0_17, %c0_18] : memref<8x128xf32, #tpu.memory_space<vmem>>, vector<8x128xf32>
    tpu.vector_store %arg8[%c0_17, %c0_18], %21 {strides = array<i32>} : memref<8x128xf32, #tpu.memory_space<vmem>>, vector<8x128xf32>,
    return
  }
  func.func @transform_0(%arg0: i32) -> (i32, i32) {
    %c0_i32 = arith.constant 0 : i32
    %c0_i32_0 = arith.constant 0 : i32
    return %arg0, %c0_i32 : i32, i32
  }
  func.func @transform_1(%arg0: i32) -> (i32, i32) {
    %c0_i32 = arith.constant 0 : i32
    %c0_i32_0 = arith.constant 0 : i32
    %c0_i32_1 = arith.constant 0 : i32
    return %c0_i32, %c0_i32_0 : i32, i32
  }
  func.func @transform_2(%arg0: i32) -> (i32, i32) {
    %c0_i32 = arith.constant 0 : i32
    %c0_i32_0 = arith.constant 0 : i32
    %c0_i32_1 = arith.constant 0 : i32
    return %c0_i32, %c0_i32_0 : i32, i32
  }
  func.func @transform_3(%arg0: i32) -> (i32, i32) {
    %c0_i32 = arith.constant 0 : i32
    %c0_i32_0 = arith.constant 0 : i32
    %c0_i32_1 = arith.constant 0 : i32
    return %c0_i32, %c0_i32_0 : i32, i32
  }
  func.func @transform_4(%arg0: i32) -> (i32, i32) {
    %c0_i32 = arith.constant 0 : i32
    %c0_i32_0 = arith.constant 0 : i32
    %c0_i32_1 = arith.constant 0 : i32
    return %c0_i32, %c0_i32_0 : i32, i32
  }
  func.func @transform_5(%arg0: i32) -> (i32, i32) {
    %c0_i32 = arith.constant 0 : i32
    %c0_i32_0 = arith.constant 0 : i32
    %c0_i32_1 = arith.constant 0 : i32
    return %c0_i32, %c0_i32_0 : i32, i32
  }
  func.func @transform_6(%arg0: i32) -> (i32, i32) {
    %c0_i32 = arith.constant 0 : i32
    %c0_i32_0 = arith.constant 0 : i32
    %c0_i32_1 = arith.constant 0 : i32
    return %c0_i32, %c0_i32_0 : i32, i32
  }
  func.func @transform_7(%arg0: i32) -> (i32, i32) {
    %c0_i32 = arith.constant 0 : i32
    %c0_i32_0 = arith.constant 0 : i32
    return %arg0, %c0_i32 : i32, i32
  }
}

</mosaic_0001>

<llo_original>
// kernel: mlp_forward.1
$region0: #{mlp_forward.1}
  #allocation0 [shape = 'u32[]', space=smem, size = 0x4, offset = 0x4, fixed_abs, tag = 'smem constant byte address 0x4 - core index']
  #allocation1 [shape = 'u32[144,128]{1,0:T(1,128)}', space=vmem, size = 0x12000, scoped, tag = 'internal scratch']
  %s0 = inlined_call_operand.vmem [shape: bf16[8,15], index: 0, kind: input, shape index: {}]
  %s1 = inlined_call_operand.vmem [shape: bf16[15,64], index: 1, kind: input, shape index: {}]
  %s2 = inlined_call_operand.vmem [shape: f32[1,64], index: 2, kind: input, shape index: {}]
  %s3 = inlined_call_operand.vmem [shape: bf16[64,32], index: 3, kind: input, shape index: {}]
  %s4 = inlined_call_operand.vmem [shape: f32[1,32], index: 4, kind: input, shape index: {}]
  %s5 = inlined_call_operand.vmem [shape: bf16[32,128], index: 5, kind: input, shape index: {}]
  %s6 = inlined_call_operand.vmem [shape: f32[1,128], index: 6, kind: input, shape index: {}]
  %s7 = inlined_call_operand.vmem [shape: f32[8,128], index: 7, kind: output, shape index: {}]
  %s8 = sld [smem:[#allocation0]]
  $region38: #{mlp_forward.1} parent=0
    _
  %s10 = ssub.s32 1, %s8
  %s11 = scalar_select 0, %s10, %s8
  // Predicated region
  $region2: #{mlp_forward.1} parent=0 // pred_check
    _
  $region3: #{mlp_forward.1} parent=0 // pred_check_branch
    %13 = sbr.rel (0) target = $region5
  $region4: #{mlp_forward.1} parent=0 // pred_region
    _
  $region5: #{mlp_forward.1} parent=0 // pred_fallthru
    _
  // Predicated region
  $region6: #{mlp_forward.1} parent=0 // pred_check
    _
  $region7: #{mlp_forward.1} parent=0 // pred_check_branch
    %15 = sbr.rel (0) target = $region9
  $region8: #{mlp_forward.1} parent=0 // pred_region
    _
  $region9: #{mlp_forward.1} parent=0 // pred_fallthru
    _
  // Predicated region
  $region10: #{mlp_forward.1} parent=0 // pred_check
    _
  $region11: #{mlp_forward.1} parent=0 // pred_check_branch
    %17 = sbr.rel (0) target = $region13
  $region12: #{mlp_forward.1} parent=0 // pred_region
    _
  $region13: #{mlp_forward.1} parent=0 // pred_fallthru
    _
  // Predicated region
  $region14: #{mlp_forward.1} parent=0 // pred_check
    _
  $region15: #{mlp_forward.1} parent=0 // pred_check_branch
    %19 = sbr.rel (0) target = $region17
  $region16: #{mlp_forward.1} parent=0 // pred_region
    _
  $region17: #{mlp_forward.1} parent=0 // pred_fallthru
    _
  // Predicated region
  $region18: #{mlp_forward.1} parent=0 // pred_check
    _
  $region19: #{mlp_forward.1} parent=0 // pred_check_branch
    %21 = sbr.rel (0) target = $region21
  $region20: #{mlp_forward.1} parent=0 // pred_region
    _
  $region21: #{mlp_forward.1} parent=0 // pred_fallthru
    _
  // Predicated region
  $region22: #{mlp_forward.1} parent=0 // pred_check
    _
  $region23: #{mlp_forward.1} parent=0 // pred_check_branch
    %23 = sbr.rel (0) target = $region25
  $region24: #{mlp_forward.1} parent=0 // pred_region
    _
  $region25: #{mlp_forward.1} parent=0 // pred_fallthru
    _
  // Predicated region
  $region26: #{mlp_forward.1} parent=0 // pred_check
    _
  $region27: #{mlp_forward.1} parent=0 // pred_check_branch
    %25 = sbr.rel (0) target = $region29
  $region28: #{mlp_forward.1} parent=0 // pred_region
    _
  $region29: #{mlp_forward.1} parent=0 // pred_fallthru
    _
  %v27 = vld [vmem:[%s0] sm:$0xf]
  %v28 = vld [vmem:[%s1] sm:$0xf]
  %v29 = vld [vmem:[%s1 + $0x4] sm:$0xf]
  %v30 = vld [vmem:[%s2] sm:$0x1]
  %v32 = vlaneseq
  %v33 = vshrl.u32 %v32, 7
  %v34 = vsub.s32 0, %v33
  %v35 = vrot.slane %v30, %v34
  %v39 = vunpack.c.l.b16 %v28
  %v40 = vunpack.c.l.b16 %v29
  %v41 = vpack.c.b16 %v40, %v39
  %vm42 = vcmask 121856
  %v44 = vsel %vm42, %v27, 0
  %vm46 = vcmask 1046528
  %vm47 = vcmask 1047552
  %v48 = vsel %vm46, 4294967295, 65535
  %v49 = vsel %vm47, %v48, 0
  %v51 = vand.u32 %v41, %v49
  %53 = vmatprep.subr.bf16.mxu0 0
  %54 = vmatpush1.bf16.msra.mxu0 %v51
  %55 = vmatprep.subr.bf16.mxu0 0
  %56 = vmatpush1.bf16.msra.mxu0 0
  %57 = vmatprep.subr.bf16.mxu0 0
  %58 = vmatpush1.bf16.msra.mxu0 0
  %59 = vmatprep.subr.bf16.mxu0 0
  %60 = vmatpush1.bf16.msra.mxu0 0
  %61 = vmatprep.subr.bf16.mxu0 0
  %62 = vmatpush1.bf16.msra.mxu0 0
  %63 = vmatprep.subr.bf16.mxu0 0
  %64 = vmatpush1.bf16.msra.mxu0 0
  %65 = vmatprep.subr.bf16.mxu0 0
  %66 = vmatpush1.bf16.msra.mxu0 0
  %67 = vmatprep.subr.bf16.mxu0 0
  %68 = vmatpush1.bf16.msra.mxu0 0
  %69 = vmatprep.subr.bf16.mxu0 0
  %70 = vmatpush1.bf16.msra.mxu0 0
  %71 = vmatprep.subr.bf16.mxu0 0
  %72 = vmatpush1.bf16.msra.mxu0 0
  %73 = vmatprep.subr.bf16.mxu0 0
  %74 = vmatpush1.bf16.msra.mxu0 0
  %75 = vmatprep.subr.bf16.mxu0 0
  %76 = vmatpush1.bf16.msra.mxu0 0
  %77 = vmatprep.subr.bf16.mxu0 0
  %78 = vmatpush1.bf16.msra.mxu0 0
  %79 = vmatprep.subr.bf16.mxu0 0
  %80 = vmatpush1.bf16.msra.mxu0 0
  %81 = vmatprep.subr.bf16.mxu0 0
  %82 = vmatpush1.bf16.msra.mxu0 0
  %83 = vmatprep.subr.bf16.mxu0 0
  %84 = vmatpush1.bf16.msra.mxu0 0
  %85 = vmatprep.mubr.bf16.mxu0 0
  %86 = vmatmul.mubr.bf16.gmra.mrb[0].mxu0 %v44
  %v87 = vpop.f32.mrb[0].mxu0
  %v88 = vadd.f32 %v35, %v87
  %v89 = vpop.f32.mrb[0].mxu0
  %v90 = vpop.f32.mrb[0].mxu0
  %v91 = vpop.f32.mrb[0].mxu0
  %92 = vdwg.mxu0
  %v93 = vmax.f32 %v88, 0.0
  %v94 = vpack.c.bf16 %v93, %v93
  %v95 = vld [vmem:[%s3] sm:$0xf]
  %v96 = vld [vmem:[%s3 + $0x4] sm:$0xf]
  %v97 = vld [vmem:[%s3 + $0x8] sm:$0xf]
  %v98 = vld [vmem:[%s3 + $0xc] sm:$0xf]
  %v99 = vld [vmem:[%s3 + $0x10] sm:$0xf]
  %v100 = vld [vmem:[%s3 + $0x14] sm:$0xf]
  %v101 = vld [vmem:[%s3 + $0x18] sm:$0xf]
  %v102 = vld [vmem:[%s3 + $0x1c] sm:$0xf]
  %v103 = vld [vmem:[%s4] sm:$0x1]
  %v105 = vlaneseq
  %v106 = vshrl.u32 %v105, 7
  %v107 = vsub.s32 0, %v106
  %v108 = vrot.slane %v103, %v107
  %v118 = vunpack.c.l.b16 %v95
  %v119 = vunpack.c.l.b16 %v96
  %v120 = vunpack.c.l.b16 %v97
  %v121 = vunpack.c.l.b16 %v98
  %v122 = vunpack.c.l.b16 %v99
  %v123 = vunpack.c.l.b16 %v100
  %v124 = vunpack.c.l.b16 %v101
  %v125 = vunpack.c.l.b16 %v102
  %v126 = vpack.c.b16 %v119, %v118
  %v127 = vpack.c.b16 %v121, %v120
  %v128 = vpack.c.b16 %v123, %v122
  %v129 = vpack.c.b16 %v125, %v124
  %vm134 = vcmask 523264
  %v136 = vsel %vm134, %v94, 0
  %138 = vmatprep.subr.bf16.mxu0 0
  %139 = vmatpush1.bf16.msra.mxu0 %v126
  %140 = vmatprep.subr.bf16.mxu0 0
  %141 = vmatpush1.bf16.msra.mxu0 %v127
  %142 = vmatprep.subr.bf16.mxu0 0
  %143 = vmatpush1.bf16.msra.mxu0 %v128
  %144 = vmatprep.subr.bf16.mxu0 0
  %145 = vmatpush1.bf16.msra.mxu0 %v129
  %146 = vmatprep.subr.bf16.mxu0 0
  %147 = vmatpush1.bf16.msra.mxu0 0
  %148 = vmatprep.subr.bf16.mxu0 0
  %149 = vmatpush1.bf16.msra.mxu0 0
  %150 = vmatprep.subr.bf16.mxu0 0
  %151 = vmatpush1.bf16.msra.mxu0 0
  %152 = vmatprep.subr.bf16.mxu0 0
  %153 = vmatpush1.bf16.msra.mxu0 0
  %154 = vmatprep.subr.bf16.mxu0 0
  %155 = vmatpush1.bf16.msra.mxu0 0
  %156 = vmatprep.subr.bf16.mxu0 0
  %157 = vmatpush1.bf16.msra.mxu0 0
  %158 = vmatprep.subr.bf16.mxu0 0
  %159 = vmatpush1.bf16.msra.mxu0 0
  %160 = vmatprep.subr.bf16.mxu0 0
  %161 = vmatpush1.bf16.msra.mxu0 0
  %162 = vmatprep.subr.bf16.mxu0 0
  %163 = vmatpush1.bf16.msra.mxu0 0
  %164 = vmatprep.subr.bf16.mxu0 0
  %165 = vmatpush1.bf16.msra.mxu0 0
  %166 = vmatprep.subr.bf16.mxu0 0
  %167 = vmatpush1.bf16.msra.mxu0 0
  %168 = vmatprep.subr.bf16.mxu0 0
  %169 = vmatpush1.bf16.msra.mxu0 0
  %170 = vmatprep.mubr.bf16.mxu0 0
  %171 = vmatmul.mubr.bf16.gmra.mrb[0].mxu0 %v136
  %v172 = vpop.f32.mrb[0].mxu0
  %v173 = vadd.f32 %v108, %v172
  %v174 = vpop.f32.mrb[0].mxu0
  %v175 = vpop.f32.mrb[0].mxu0
  %v176 = vpop.f32.mrb[0].mxu0
  %177 = vdwg.mxu0
  %v178 = vmax.f32 %v173, 0.0
  %v179 = vpack.c.bf16 %v178, %v178
  %v180 = vld [vmem:[%s5] sm:$0xf]
  %v181 = vld [vmem:[%s5 + $0x4] sm:$0xf]
  %v182 = vld [vmem:[%s5 + $0x8] sm:$0xf]
  %v183 = vld [vmem:[%s5 + $0xc] sm:$0xf]
  %v184 = vld [vmem:[%s6] sm:$0x1]
  %v186 = vlaneseq
  %v187 = vshrl.u32 %v186, 7
  %v188 = vsub.s32 0, %v187
  %v189 = vrot.slane %v184, %v188
  %v195 = vunpack.c.l.b16 %v180
  %v196 = vunpack.c.l.b16 %v181
  %v197 = vunpack.c.l.b16 %v182
  %v198 = vunpack.c.l.b16 %v183
  %v199 = vpack.c.b16 %v196, %v195
  %v200 = vpack.c.b16 %v198, %v197
  %vm203 = vcmask 261120
  %v205 = vsel %vm203, %v179, 0
  %207 = vmatprep.subr.bf16.mxu0 0
  %208 = vmatpush1.bf16.msra.mxu0 %v199
  %209 = vmatprep.subr.bf16.mxu0 0
  %210 = vmatpush1.bf16.msra.mxu0 %v200
  %211 = vmatprep.subr.bf16.mxu0 0
  %212 = vmatpush1.bf16.msra.mxu0 0
  %213 = vmatprep.subr.bf16.mxu0 0
  %214 = vmatpush1.bf16.msra.mxu0 0
  %215 = vmatprep.subr.bf16.mxu0 0
  %216 = vmatpush1.bf16.msra.mxu0 0
  %217 = vmatprep.subr.bf16.mxu0 0
  %218 = vmatpush1.bf16.msra.mxu0 0
  %219 = vmatprep.subr.bf16.mxu0 0
  %220 = vmatpush1.bf16.msra.mxu0 0
  %221 = vmatprep.subr.bf16.mxu0 0
  %222 = vmatpush1.bf16.msra.mxu0 0
  %223 = vmatprep.subr.bf16.mxu0 0
  %224 = vmatpush1.bf16.msra.mxu0 0
  %225 = vmatprep.subr.bf16.mxu0 0
  %226 = vmatpush1.bf16.msra.mxu0 0
  %227 = vmatprep.subr.bf16.mxu0 0
  %228 = vmatpush1.bf16.msra.mxu0 0
  %229 = vmatprep.subr.bf16.mxu0 0
  %230 = vmatpush1.bf16.msra.mxu0 0
  %231 = vmatprep.subr.bf16.mxu0 0
  %232 = vmatpush1.bf16.msra.mxu0 0
  %233 = vmatprep.subr.bf16.mxu0 0
  %234 = vmatpush1.bf16.msra.mxu0 0
  %235 = vmatprep.subr.bf16.mxu0 0
  %236 = vmatpush1.bf16.msra.mxu0 0
  %237 = vmatprep.subr.bf16.mxu0 0
  %238 = vmatpush1.bf16.msra.mxu0 0
  %239 = vmatprep.mubr.bf16.mxu0 0
  %240 = vmatmul.mubr.bf16.gmra.mrb[0].mxu0 %v205
  %v241 = vpop.f32.mrb[0].mxu0
  %v242 = vadd.f32 %v189, %v241
  %v243 = vpop.f32.mrb[0].mxu0
  %v244 = vpop.f32.mrb[0].mxu0
  %v245 = vpop.f32.mrb[0].mxu0
  %246 = vdwg.mxu0
  %247 = vst [vmem:[%s7] sm:$0xff] %v242
  // Predicated region
  $region30: #{mlp_forward.1} parent=0 // pred_check
    _
  $region31: #{mlp_forward.1} parent=0 // pred_check_branch
    %249 = sbr.rel (0) target = $region33
  $region32: #{mlp_forward.1} parent=0 // pred_region
    _
  $region33: #{mlp_forward.1} parent=0 // pred_fallthru
    _
  // Predicated region
  $region34: #{mlp_forward.1} parent=0 // pred_check
    _
  $region35: #{mlp_forward.1} parent=0 // pred_check_branch
    %251 = sbr.rel (0) target = $region37
  $region36: #{mlp_forward.1} parent=0 // pred_region
    _
  $region37: #{mlp_forward.1} parent=0 // pred_fallthru
    _

</llo_original>
